<compile_context>
chip_gen: v7x
topology: tpu7x:2x2x1
jax: 0.10.0
libtpu: 0.0.40
codegen_flags: <defaults>
</compile_context>

<pallas_src>
import functools

import jax
import jax.numpy as jnp
from jax.experimental import pallas as pl
from jax.experimental.pallas import tpu as pltpu


_VMEM_TILE_BUDGET = 32 * 1024 * 1024   # conservative: fits v7x (64 MiB physical)
_VMEM_LIMIT_BYTES = 48 * 1024 * 1024   # raise above the 16/32 MiB scoped defaults


def _round_up(x, m):
    return ((x + m - 1) // m) * m


# ----------------------------- kernels --------------------------------------


def _patch_embed_kernel(p_ref, w_ref, b_ref, o_ref):
    # p_ref: (tm, K)  w_ref: (K, E)  b_ref: (1, E)  o_ref: (tm, E)
    acc = jnp.dot(p_ref[...], w_ref[...], preferred_element_type=jnp.float32)
    o_ref[...] = (acc + b_ref[...]).astype(o_ref.dtype)


def _patch_embed_kernel_ktiled(p_ref, w_ref, b_ref, o_ref, acc_ref):
    # Grid = (row tiles [parallel], K tiles [arbitrary, last]); acc_ref f32.
    k = pl.program_id(1)

    @pl.when(k == 0)
    def _():
        acc_ref[...] = jnp.zeros_like(acc_ref)

    acc_ref[...] += jnp.dot(p_ref[...], w_ref[...],
                            preferred_element_type=jnp.float32)

    @pl.when(k == pl.num_programs(1) - 1)
    def _():
        o_ref[...] = (acc_ref[...] + b_ref[...]).astype(o_ref.dtype)


# ----------------------------- wrapper ---------------------------------------


def _extract_patches(x, patch, dtype):
    """(B, C, H, W) -> (B*gh*gw, C*P*P); patch vector in (c, ph, pw) order."""
    B, C, H, W = x.shape
    gh, gw = H // patch, W // patch
    x = x.astype(dtype)                              # cast before transpose: fewer bytes moved
    x = x.reshape(B, C, gh, patch, gw, patch)
    x = x.transpose(0, 2, 4, 1, 3, 5)                # (B, gh, gw, C, P, P)
    return x.reshape(B * gh * gw, C * patch * patch)


def _choose_tiles(M, K, E, op_bytes):
    """Pick (tm, tk) under a conservative, generation-safe VMEM budget."""
    tk = K if K <= 1024 else 512
    tm = 8
    for cand in (1024, 512, 256, 128, 64, 32, 16, 8):
        # double-buffered bf16 patches + weight blocks, double-buffered f32 out,
        # f32 accumulator scratch, f32 bias.
        vmem = (2 * (cand * tk * op_bytes + tk * E * op_bytes + cand * E * 4)
                + cand * E * 4 + 2 * E * 4)
        if vmem <= _VMEM_TILE_BUDGET:
            tm = cand
            break
    if M >= 256:
        # Keep >= 2 row-grid steps so the "parallel" axis can shard across
        # v7x's two TensorCores and the DMA pipeline has something to overlap.
        tm = min(tm, _round_up(-(-M // 2), 8))
    tm = min(tm, _round_up(M, 8))
    return max(tm, 8), tk


def prepare_proj_params(w_conv, bias, operand_dtype=jnp.bfloat16):
    """Hoisted weight prep: (E, C, P, P) conv weight -> (K, E) matmul weight."""
    E = w_conv.shape[0]
    K = w_conv.shape[1] * w_conv.shape[2] * w_conv.shape[3]
    w_mat = jnp.asarray(w_conv).reshape(E, K).T.astype(operand_dtype)  # (K, E)
    b2d = jnp.asarray(bias).reshape(1, E).astype(jnp.float32)          # (1, E)
    return w_mat, b2d


def flexible_patch_embed_forward(x, w_mat, b2d, patch_size, *,
                                 out_dtype=jnp.float32):
    """x: (B, C, H, W); w_mat: (C*P*P, E) (from prepare_proj_params); b2d: (1, E).
    Returns (B, num_patches, E) — FlexiblePatchEmbed.forward with flatten=True,
    norm_layer=None."""
    B, C, H, W = x.shape
    P = patch_size
    if H % P != 0 or W % P != 0:
        raise ValueError(f"Input size ({H}, {W}) is not divisible by patch_size {P}")
    gh, gw = H // P, W // P
    K = C * P * P
    E = int(w_mat.shape[1])
    if int(w_mat.shape[0]) != K:
        raise ValueError(f"weight K={w_mat.shape[0]} does not match C*P*P={K}")
    M = B * gh * gw

    operand_dtype = w_mat.dtype
    op_bytes = jnp.dtype(operand_dtype).itemsize
    tm, tk = _choose_tiles(M, K, E, op_bytes)

    patches = _extract_patches(x, P, operand_dtype)                 # (M, K)

    # Pad rows (and K for the K-tiled path) with zeros so every block is full:
    # stores stay unmasked and no fragile divisibility fallback is needed.
    M_pad = _round_up(M, tm)
    K_pad = _round_up(K, tk)
    if M_pad != M or K_pad != K:
        patches = jnp.pad(patches, ((0, M_pad - M), (0, K_pad - K)))
    if K_pad != K:
        w_mat = jnp.pad(w_mat, ((0, K_pad - K), (0, 0)))

    grid_m = M_pad // tm
    grid_k = K_pad // tk

    cost = pl.CostEstimate(
        flops=2 * M_pad * K_pad * E,
        transcendentals=0,
        bytes_accessed=op_bytes * (M_pad * K_pad + K_pad * E) + 4 * (E + M_pad * E),
    )

    if grid_k == 1:
        out = pl.pallas_call(
            _patch_embed_kernel,
            out_shape=jax.ShapeDtypeStruct((M_pad, E), out_dtype),
            grid=(grid_m,),
            in_specs=[
                pl.BlockSpec((tm, K_pad), lambda i: (i, 0)),
                pl.BlockSpec((K_pad, E), lambda i: (0, 0)),   # VMEM-resident weight
                pl.BlockSpec((1, E), lambda i: (0, 0)),       # VMEM-resident bias
            ],
            out_specs=pl.BlockSpec((tm, E), lambda i: (i, 0)),
            compiler_params=pltpu.CompilerParams(
                dimension_semantics=("parallel",),
                vmem_limit_bytes=_VMEM_LIMIT_BYTES,
            ),
            cost_estimate=cost,
        )(patches, w_mat, b2d)
    else:
        out = pl.pallas_call(
            _patch_embed_kernel_ktiled,
            out_shape=jax.ShapeDtypeStruct((M_pad, E), out_dtype),
            grid=(grid_m, grid_k),
            in_specs=[
                pl.BlockSpec((tm, tk), lambda i, k: (i, k)),
                pl.BlockSpec((tk, E), lambda i, k: (k, 0)),
                pl.BlockSpec((1, E), lambda i, k: (0, 0)),
            ],
            out_specs=pl.BlockSpec((tm, E), lambda i, k: (i, 0)),
            scratch_shapes=[pltpu.VMEM((tm, E), jnp.float32)],
            compiler_params=pltpu.CompilerParams(
                dimension_semantics=("parallel", "arbitrary"),
                vmem_limit_bytes=_VMEM_LIMIT_BYTES,
            ),
            cost_estimate=cost,
        )(patches, w_mat, b2d)

    if M_pad != M:
        out = out[:M]
    return out.reshape(B, gh * gw, E)


# ----------------------------- reference & test ------------------------------


def _reference_forward(x, w_conv, bias, patch_size):
    """Pure-JAX reference: actual strided conv + flatten + transpose."""
    y = jax.lax.conv_general_dilated(
        x.astype(jnp.float32),
        w_conv.astype(jnp.float32),
        window_strides=(patch_size, patch_size),
        padding="VALID",
        dimension_numbers=("NCHW", "OIHW", "NCHW"),
        precision=jax.lax.Precision.HIGHEST,
    )
    y = y + bias[None, :, None, None]
    B, E, gh, gw = y.shape
    return y.reshape(B, E, gh * gw).transpose(0, 2, 1)   # (B, num_patches, E)


if __name__ == "__main__":
    key = jax.random.PRNGKey(0)

    def run_case(B, C, H, W, P, E, key, tag):
        kx, kw, kb, key = jax.random.split(key, 4)
        x = jax.random.normal(kx, (B, C, H, W), jnp.float32)
        w_conv = jax.random.normal(kw, (E, C, P, P), jnp.float32) * 0.02
        bias = jax.random.normal(kb, (E,), jnp.float32) * 0.02

        w_mat, b2d = prepare_proj_params(w_conv, bias)           # hoisted weight prep
        fwd = jax.jit(functools.partial(flexible_patch_embed_forward, patch_size=P))
        out = jax.block_until_ready(fwd(x, w_mat, b2d))

        num_patches = (H // P) * (W // P)
        assert out.shape == (B, num_patches, E), (tag, out.shape)

        # Semantic check vs. the true f32 conv (loose: bf16 operand quantization).
        ref = _reference_forward(x, w_conv, bias, P)
        assert jnp.allclose(out, ref, atol=2e-2, rtol=2e-2), f"mismatch vs conv ({tag})"

        # Tight structural check vs. a reference with the same bf16-quantized inputs.
        ref_q = _reference_forward(x.astype(jnp.bfloat16).astype(jnp.float32),
                                   w_conv.astype(jnp.bfloat16).astype(jnp.float32),
                                   bias, P)
        assert jnp.allclose(out, ref_q, atol=2e-3, rtol=2e-3), f"mismatch vs quantized ref ({tag})"
        return key

    # Case 1: tiny shapes -> single row block, single K block (M=8, K=256).
    key = run_case(2, 4, 16, 16, 8, 128, key, "small")
    # Case 2: many patches -> row-tiled "parallel" grid (M=1024 -> 2 row tiles).
    key = run_case(4, 4, 64, 64, 4, 128, key, "row-tiled")
    # Case 3: large patch vector (K = 8*16*16 = 2048) -> K-tiled accumulator path.
    key = run_case(2, 8, 32, 32, 16, 128, key, "k-tiled")

    print("KERNEL_OK")
</pallas_src>

<mosaic_0001>
module attributes {stable_mosaic.version = 11 : i64} {
  func.func @_patch_embed_kernel(%arg0: i32, %arg1: memref<8x256xbf16, #tpu.memory_space<vmem>>, %arg2: memref<256x128xbf16, #tpu.memory_space<vmem>>, %arg3: memref<1x128xf32, #tpu.memory_space<vmem>>, %arg4: memref<8x128xf32, #tpu.memory_space<vmem>>) attributes {dimension_semantics = [#tpu.dimension_semantics<parallel>], iteration_bounds = array<i64: 1>, scalar_prefetch = 0 : i64, scratch_operands = 0 : i64, tpu.core_type = #tpu.core_type<tc>, window_params = [{transform_indices = @transform_0, window_bounds = array<i64: 8, 256>}, {pipeline_mode = #tpu.pipeline_mode<synchronous>, transform_indices = @transform_1, window_bounds = array<i64: 256, 128>}, {pipeline_mode = #tpu.pipeline_mode<synchronous>, transform_indices = @transform_2, window_bounds = array<i64: 1, 128>}, {transform_indices = @transform_3, window_bounds = array<i64: 8, 128>}]} {
    %c0 = arith.constant 0 : index
    %c0_0 = arith.constant 0 : index
    %0 = vector.load %arg1[%c0, %c0_0] : memref<8x256xbf16, #tpu.memory_space<vmem>>, vector<8x256xbf16>
    %c0_1 = arith.constant 0 : index
    %c0_2 = arith.constant 0 : index
    %1 = vector.load %arg2[%c0_1, %c0_2] : memref<256x128xbf16, #tpu.memory_space<vmem>>, vector<256x128xbf16>
    %cst = arith.constant dense<0.000000e+00> : vector<8x128xf32>
    %2 = tpu.matmul %0, %1, %cst {dimension_numbers = #tpu.dot_dimension_numbers<[1], [0], [0], [1], [0, 0, 1, 1], [], []>} : vector<8x256xbf16>, vector<256x128xbf16>, vector<8x128xf32> -> vector<8x128xf32>
    %c0_3 = arith.constant 0 : index
    %c0_4 = arith.constant 0 : index
    %3 = vector.load %arg3[%c0_3, %c0_4] : memref<1x128xf32, #tpu.memory_space<vmem>>, vector<1x128xf32>
    %4 = vector.broadcast %3 : vector<1x128xf32> to vector<8x128xf32>
    %5 = arith.addf %2, %4 : vector<8x128xf32>
    %c0_5 = arith.constant 0 : index
    %c0_6 = arith.constant 0 : index
    %6 = vector.load %arg4[%c0_5, %c0_6] : memref<8x128xf32, #tpu.memory_space<vmem>>, vector<8x128xf32>
    tpu.vector_store %arg4[%c0_5, %c0_6], %5 {strides = array<i32>} : memref<8x128xf32, #tpu.memory_space<vmem>>, vector<8x128xf32>,
    return
  }
  func.func @transform_0(%arg0: i32) -> (i32, i32) {
    %c0_i32 = arith.constant 0 : i32
    %c0_i32_0 = arith.constant 0 : i32
    return %arg0, %c0_i32 : i32, i32
  }
  func.func @transform_1(%arg0: i32) -> (i32, i32) {
    %c0_i32 = arith.constant 0 : i32
    %c0_i32_0 = arith.constant 0 : i32
    %c0_i32_1 = arith.constant 0 : i32
    return %c0_i32, %c0_i32_0 : i32, i32
  }
  func.func @transform_2(%arg0: i32) -> (i32, i32) {
    %c0_i32 = arith.constant 0 : i32
    %c0_i32_0 = arith.constant 0 : i32
    %c0_i32_1 = arith.constant 0 : i32
    return %c0_i32, %c0_i32_0 : i32, i32
  }
  func.func @transform_3(%arg0: i32) -> (i32, i32) {
    %c0_i32 = arith.constant 0 : i32
    %c0_i32_0 = arith.constant 0 : i32
    return %arg0, %c0_i32 : i32, i32
  }
}

</mosaic_0001>

<llo_original>
// kernel: flexible_patch_embed_forward.1
$region0: #{flexible_patch_embed_forward.1}
  #allocation0 [shape = 'u32[]', space=smem, size = 0x4, offset = 0x4, fixed_abs, tag = 'smem constant byte address 0x4 - core index']
  #allocation1 [shape = 'u32[144,128]{1,0:T(1,128)}', space=vmem, size = 0x12000, scoped, tag = 'internal scratch']
  %s0 = inlined_call_operand.vmem [shape: bf16[8,256], index: 0, kind: input, shape index: {}]
  %s1 = inlined_call_operand.vmem [shape: bf16[256,128], index: 1, kind: input, shape index: {}]
  %s2 = inlined_call_operand.vmem [shape: f32[1,128], index: 2, kind: input, shape index: {}]
  %s3 = inlined_call_operand.hbm [shape: f32[8,128], index: 3, kind: output, shape index: {}]
  %s4 = sld [smem:[#allocation0]]
  $region22: #{flexible_patch_embed_forward.1} parent=0
    _
  %s6 = ssub.s32 1, %s4
  %s7 = scalar_select 0, %s6, %s4
  $region1: #{flexible_patch_embed_forward.1} parent=0
    #allocation2 [shape = 'u8[4096]{0}', space=vmem, size = 0x1000, scoped, tag = 'output window, operand 0, single buffered']
    #allocation3 [shape = 's32[1]{0}', space=sflag, size = 0x4, scoped, tag = 'scoped memory for flexible_patch_embed_forward.1']
    %8 = vsyncpa [#allocation3], 0
    // Predicated region
    $region2: #{flexible_patch_embed_forward.1} parent=1 // pred_check
      _
    $region3: #{flexible_patch_embed_forward.1} parent=1 // pred_check_branch
      %10 = sbr.rel (0) target = $region5
    $region4: #{flexible_patch_embed_forward.1} parent=1 // pred_region
      _
    $region5: #{flexible_patch_embed_forward.1} parent=1 // pred_fallthru
      _
    // Predicated region
    $region6: #{flexible_patch_embed_forward.1} parent=1 // pred_check
      _
    $region7: #{flexible_patch_embed_forward.1} parent=1 // pred_check_branch
      %12 = sbr.rel (0) target = $region9
    $region8: #{flexible_patch_embed_forward.1} parent=1 // pred_region
      _
    $region9: #{flexible_patch_embed_forward.1} parent=1 // pred_fallthru
      _
    // Predicated region
    $region10: #{flexible_patch_embed_forward.1} parent=1 // pred_check
      _
    $region11: #{flexible_patch_embed_forward.1} parent=1 // pred_check_branch
      %14 = sbr.rel (0) target = $region13
    $region12: #{flexible_patch_embed_forward.1} parent=1 // pred_region
      _
    $region13: #{flexible_patch_embed_forward.1} parent=1 // pred_fallthru
      _
    %v16 = vld [vmem:[%s0] sm:$0xff]
    %v17 = vld [vmem:[%s1] sm:$0xf]
    %v18 = vld [vmem:[%s1 + $0x4] sm:$0xf]
    %v19 = vld [vmem:[%s1 + $0x8] sm:$0xf]
    %v20 = vld [vmem:[%s1 + $0xc] sm:$0xf]
    %v21 = vld [vmem:[%s1 + $0x10] sm:$0xf]
    %v22 = vld [vmem:[%s1 + $0x14] sm:$0xf]
    %v23 = vld [vmem:[%s1 + $0x18] sm:$0xf]
    %v24 = vld [vmem:[%s1 + $0x1c] sm:$0xf]
    %v25 = vld [vmem:[%s1 + $0x20] sm:$0xf]
    %v26 = vld [vmem:[%s1 + $0x24] sm:$0xf]
    %v27 = vld [vmem:[%s1 + $0x28] sm:$0xf]
    %v28 = vld [vmem:[%s1 + $0x2c] sm:$0xf]
    %v29 = vld [vmem:[%s1 + $0x30] sm:$0xf]
    %v30 = vld [vmem:[%s1 + $0x34] sm:$0xf]
    %v31 = vld [vmem:[%s1 + $0x38] sm:$0xf]
    %v32 = vld [vmem:[%s1 + $0x3c] sm:$0xf]
    %v33 = vld [vmem:[%s1 + $0x40] sm:$0xf]
    %v34 = vld [vmem:[%s1 + $0x44] sm:$0xf]
    %v35 = vld [vmem:[%s1 + $0x48] sm:$0xf]
    %v36 = vld [vmem:[%s1 + $0x4c] sm:$0xf]
    %v37 = vld [vmem:[%s1 + $0x50] sm:$0xf]
    %v38 = vld [vmem:[%s1 + $0x54] sm:$0xf]
    %v39 = vld [vmem:[%s1 + $0x58] sm:$0xf]
    %v40 = vld [vmem:[%s1 + $0x5c] sm:$0xf]
    %v41 = vld [vmem:[%s1 + $0x60] sm:$0xf]
    %v42 = vld [vmem:[%s1 + $0x64] sm:$0xf]
    %v43 = vld [vmem:[%s1 + $0x68] sm:$0xf]
    %v44 = vld [vmem:[%s1 + $0x6c] sm:$0xf]
    %v45 = vld [vmem:[%s1 + $0x70] sm:$0xf]
    %v46 = vld [vmem:[%s1 + $0x74] sm:$0xf]
    %v47 = vld [vmem:[%s1 + $0x78] sm:$0xf]
    %v48 = vld [vmem:[%s1 + $0x7c] sm:$0xf]
    %v49 = vld [vmem:[%s2] sm:$0x1]
    %v51 = vlaneseq
    %v52 = vshrl.u32 %v51, 7
    %v53 = vsub.s32 0, %v52
    %v54 = vrot.slane %v49, %v53
    %v57 = vunpack.c.l.b16 %v16
    %v58 = vunpack.c.h.b16 %v16
    %v59 = vpack.c.b16 %v57, %v57
    %v60 = vpack.c.b16 %v58, %v58
    %v95 = vunpack.c.l.b16 %v17
    %v96 = vunpack.c.l.b16 %v18
    %v97 = vunpack.c.l.b16 %v19
    %v98 = vunpack.c.l.b16 %v20
    %v99 = vunpack.c.l.b16 %v21
    %v100 = vunpack.c.l.b16 %v22
    %v101 = vunpack.c.l.b16 %v23
    %v102 = vunpack.c.l.b16 %v24
    %v103 = vunpack.c.l.b16 %v25
    %v104 = vunpack.c.l.b16 %v26
    %v105 = vunpack.c.l.b16 %v27
    %v106 = vunpack.c.l.b16 %v28
    %v107 = vunpack.c.l.b16 %v29
    %v108 = vunpack.c.l.b16 %v30
    %v109 = vunpack.c.l.b16 %v31
    %v110 = vunpack.c.l.b16 %v32
    %v111 = vunpack.c.l.b16 %v33
    %v112 = vunpack.c.l.b16 %v34
    %v113 = vunpack.c.l.b16 %v35
    %v114 = vunpack.c.l.b16 %v36
    %v115 = vunpack.c.l.b16 %v37
    %v116 = vunpack.c.l.b16 %v38
    %v117 = vunpack.c.l.b16 %v39
    %v118 = vunpack.c.l.b16 %v40
    %v119 = vunpack.c.l.b16 %v41
    %v120 = vunpack.c.l.b16 %v42
    %v121 = vunpack.c.l.b16 %v43
    %v122 = vunpack.c.l.b16 %v44
    %v123 = vunpack.c.l.b16 %v45
    %v124 = vunpack.c.l.b16 %v46
    %v125 = vunpack.c.l.b16 %v47
    %v126 = vunpack.c.l.b16 %v48
    %v127 = vpack.c.b16 %v96, %v95
    %v128 = vpack.c.b16 %v98, %v97
    %v129 = vpack.c.b16 %v100, %v99
    %v130 = vpack.c.b16 %v102, %v101
    %v131 = vpack.c.b16 %v104, %v103
    %v132 = vpack.c.b16 %v106, %v105
    %v133 = vpack.c.b16 %v108, %v107
    %v134 = vpack.c.b16 %v110, %v109
    %v135 = vpack.c.b16 %v112, %v111
    %v136 = vpack.c.b16 %v114, %v113
    %v137 = vpack.c.b16 %v116, %v115
    %v138 = vpack.c.b16 %v118, %v117
    %v139 = vpack.c.b16 %v120, %v119
    %v140 = vpack.c.b16 %v122, %v121
    %v141 = vpack.c.b16 %v124, %v123
    %v142 = vpack.c.b16 %v126, %v125
    %159 = vmatprep.subr.bf16.mxu0 0
    %160 = vmatpush1.bf16.msra.mxu0 %v127
    %161 = vmatprep.subr.bf16.mxu0 0
    %162 = vmatpush1.bf16.msra.mxu0 %v128
    %163 = vmatprep.subr.bf16.mxu0 0
    %164 = vmatpush1.bf16.msra.mxu0 %v129
    %165 = vmatprep.subr.bf16.mxu0 0
    %166 = vmatpush1.bf16.msra.mxu0 %v130
    %167 = vmatprep.subr.bf16.mxu0 0
    %168 = vmatpush1.bf16.msra.mxu0 %v131
    %169 = vmatprep.subr.bf16.mxu0 0
    %170 = vmatpush1.bf16.msra.mxu0 %v132
    %171 = vmatprep.subr.bf16.mxu0 0
    %172 = vmatpush1.bf16.msra.mxu0 %v133
    %173 = vmatprep.subr.bf16.mxu0 0
    %174 = vmatpush1.bf16.msra.mxu0 %v134
    %175 = vmatprep.subr.bf16.mxu0 0
    %176 = vmatpush1.bf16.msra.mxu0 %v135
    %177 = vmatprep.subr.bf16.mxu0 0
    %178 = vmatpush1.bf16.msra.mxu0 %v136
    %179 = vmatprep.subr.bf16.mxu0 0
    %180 = vmatpush1.bf16.msra.mxu0 %v137
    %181 = vmatprep.subr.bf16.mxu0 0
    %182 = vmatpush1.bf16.msra.mxu0 %v138
    %183 = vmatprep.subr.bf16.mxu0 0
    %184 = vmatpush1.bf16.msra.mxu0 %v139
    %185 = vmatprep.subr.bf16.mxu0 0
    %186 = vmatpush1.bf16.msra.mxu0 %v140
    %187 = vmatprep.subr.bf16.mxu0 0
    %188 = vmatpush1.bf16.msra.mxu0 %v141
    %189 = vmatprep.subr.bf16.mxu0 0
    %190 = vmatpush1.bf16.msra.mxu0 %v142
    %191 = vmatprep.mubr.bf16.mxu0 %v60
    %192 = vmatmul.mubr.bf16.gmra.mrb[0].mxu0 %v59
    %v193 = vpop.f32.mrb[0].mxu0
    %v194 = vadd.f32 %v54, %v193
    %v195 = vpop.f32.mrb[0].mxu0
    %v196 = vpop.f32.mrb[0].mxu0
    %v197 = vpop.f32.mrb[0].mxu0
    %198 = vdwg.mxu0
    %199 = vst [vmem:[#allocation2] sm:$0xff] %v194
    // Predicated region
    $region14: #{flexible_patch_embed_forward.1} parent=1 // pred_check
      _
    $region15: #{flexible_patch_embed_forward.1} parent=1 // pred_check_branch
      %201 = sbr.rel (0) target = $region17
    $region16: #{flexible_patch_embed_forward.1} parent=1 // pred_region
      %s203 = ssub.s32 128, 128
      %204 = vsyncadd [#allocation3], %s203
      %s206 = sshll.u32 [#allocation2], 4
      %s207 = int_to_ptr.vmem [resolvable:$true] %s206
      %209 = dma.vmem_to_hbm [thread:$0]  %s207, 128, %s3, [#allocation3]
    $region17: #{flexible_patch_embed_forward.1} parent=1 // pred_fallthru
      _
    // Predicated region
    $region18: #{flexible_patch_embed_forward.1} parent=1 // pred_check
      _
    $region19: #{flexible_patch_embed_forward.1} parent=1 // pred_check_branch
      %211 = sbr.rel (0) target = $region21
    $region20: #{flexible_patch_embed_forward.1} parent=1 // pred_region
      %212 = dma.done [#allocation3], 128
    $region21: #{flexible_patch_embed_forward.1} parent=1 // pred_fallthru
      _
    %213 = vsyncpa [#allocation3], 1

</llo_original>
